<compile_context>
chip_gen: v6e
topology: v6e:2x2x1
jax: 0.10.0
libtpu: 0.0.40
codegen_flags: <defaults>
</compile_context>

<pallas_src>
import functools

import jax
import jax.numpy as jnp
from jax.experimental import pallas as pl
from jax.experimental.pallas import tpu as pltpu


def _round_up(x, m):
    return ((x + m - 1) // m) * m


def _tile(n, max_tile, align):
    """Largest tile <= max_tile that divides n and is a multiple of `align`.
    Falls back to the full dimension (a full-extent block is always legal)."""
    if n <= max_tile:
        return n
    t = (max_tile // align) * align
    while t >= align:
        if n % t == 0:
            return t
        t -= align
    return n  # TODO(synk): kv-tile masking for ragged / non-divisible sequence lengths


def _vmem_limit_bytes():
    """Per-generation scoped-VMEM budget: ~75% of physical VMEM
    (~96 MiB on v5e/v6e 128 MiB parts, ~48 MiB on v7x 64 MiB parts)."""
    cap = 128 * 1024 * 1024
    try:
        cap = int(pltpu.get_tpu_info().vmem_capacity_bytes)
    except Exception:
        pass
    return max(32 * 1024 * 1024, (cap * 3) // 4)


# -----------------------------------------------------------------------------
# fused linear (x @ W + b), row- and column-tiled
# -----------------------------------------------------------------------------
def _linear_kernel(x_ref, w_ref, b_ref, o_ref):
    # x/w already arrive in the compute dtype (no per-step VPU cast of the weight).
    acc = jnp.dot(x_ref[...], w_ref[...], preferred_element_type=jnp.float32)
    acc = acc + b_ref[0]                       # f32 bias added to f32 accumulator
    o_ref[...] = acc.astype(o_ref.dtype)


def _linear_pallas(x2d, w, b, *, out_dtype, vmem_limit, max_row_tile=512):
    """x2d: (R, cin), w: (cin, cout), b: (1, cout) -> (R, cout) in out_dtype."""
    R, cin = x2d.shape
    cout = w.shape[1]
    tr = _tile(R, max_row_tile, 8)
    # Keep the whole weight resident (constant block index -> fetched once) when it
    # comfortably fits; otherwise tile cout so the weight block fits v7x's 64 MiB.
    w_bytes = cin * cout * w.dtype.itemsize
    tn = cout if w_bytes <= vmem_limit // 4 else _tile(cout, 512, 128)
    return pl.pallas_call(
        _linear_kernel,
        out_shape=jax.ShapeDtypeStruct((R, cout), out_dtype),
        grid_spec=pltpu.PrefetchScalarGridSpec(
            num_scalar_prefetch=0,
            grid=(R // tr, cout // tn),
            in_specs=[
                pl.BlockSpec((tr, cin), lambda i, j: (i, 0)),
                pl.BlockSpec((cin, tn), lambda i, j: (0, j)),
                pl.BlockSpec((1, tn), lambda i, j: (0, j)),
            ],
            out_specs=pl.BlockSpec((tr, tn), lambda i, j: (i, j)),
        ),
        compiler_params=pltpu.CompilerParams(
            dimension_semantics=("parallel", "parallel"),
            vmem_limit_bytes=vmem_limit),
    )(x2d, w, b)


# -----------------------------------------------------------------------------
# flash-style attention (online softmax over kv tiles) fused with output proj
# -----------------------------------------------------------------------------
def _flash_attn_proj_kernel(q_ref, k_ref, v_ref, wp_ref, bp_ref, o_ref,
                            m_scr, l_scr, acc_scr, *, compute_dtype):
    ki = pl.program_id(2)

    @pl.when(ki == 0)
    def _init():
        m_scr[...] = jnp.full_like(m_scr, -jnp.inf)
        l_scr[...] = jnp.zeros_like(l_scr)
        acc_scr[...] = jnp.zeros_like(acc_scr)

    # (H, tq, hd) / (H, tkv, hd), already in compute_dtype (bf16 by default).
    # Softmax scale was folded into the q columns of W_qkv in the wrapper.
    q = q_ref[0]
    k = k_ref[0]
    v = v_ref[0]

    # All heads in one batched MXU contraction over hd; no explicit k transpose.
    s = jnp.einsum('hqd,hkd->hqk', q, k,
                   preferred_element_type=jnp.float32)          # (H, tq, tkv) f32

    m_prev = m_scr[...]
    m_new = jnp.maximum(m_prev, jnp.max(s, axis=-1, keepdims=True))
    alpha = jnp.exp(m_prev - m_new)
    p = jnp.exp(s - m_new)
    l_scr[...] = alpha * l_scr[...] + jnp.sum(p, axis=-1, keepdims=True)
    acc_scr[...] = alpha * acc_scr[...] + jnp.einsum(
        'hqk,hkd->hqd', p.astype(compute_dtype), v,
        preferred_element_type=jnp.float32)                     # (H, tq, hd) f32
    m_scr[...] = m_new

    @pl.when(ki == pl.num_programs(2) - 1)
    def _finalize():
        inv_l = pl.reciprocal(l_scr[...], approx=True)          # EUP slot, ~free next to exp
        y_heads = (acc_scr[...] * inv_l).astype(compute_dtype)  # (H, tq, hd)
        # Output projection straight from the (H, tq, hd) accumulator layout:
        # batched-over-head matmul against the pre-split (H, hd, C) weight, then a
        # cheap head sum.  Replaces the per-head concatenate (H XLU relayouts).
        ctx = jnp.einsum('hqd,hdc->hqc', y_heads, wp_ref[...],
                         preferred_element_type=jnp.float32)    # (H, tq, C) f32
        out = jnp.sum(ctx, axis=0) + bp_ref[0]                  # (tq, C)
        o_ref[0] = out.astype(o_ref.dtype)   # single lane-dense (tq, C) store per q-tile


def _attn_vmem_estimate(tq, tkv, H, hd, C, comp_bytes):
    """Rough flash-kernel VMEM footprint (lane/sublane padded, pipeline buffers included)."""
    hd_l = _round_up(hd, 128)
    c_l = _round_up(C, 128)
    tq_s = _round_up(tq, 8)
    tkv_s = _round_up(tkv, 8)
    q_blk = 2 * H * tq_s * hd_l * comp_bytes             # q, double-buffered
    kv_blk = 2 * 2 * H * tkv_s * hd_l * comp_bytes       # k + v, double-buffered
    w_blk = 2 * _round_up(H * hd, 8) * c_l * comp_bytes  # proj weight (constant index)
    out_blk = 2 * tq_s * c_l * 4                          # f32 output tile
    scratch = H * tq_s * (2 * 128 + hd_l) * 4             # m, l, acc (f32)
    return q_blk + kv_blk + w_blk + out_blk + scratch


def _choose_attn_tiles(N, C, num_heads, comp_bytes, vmem_limit):
    """Per-generation q/kv tile selection (512 on 128 MiB parts, 256 on v7x's 64 MiB)."""
    hd = C // num_heads
    big_vmem = vmem_limit >= 80 * 1024 * 1024
    tq = _tile(N, 512 if big_vmem else 256, 8)
    tkv = _tile(N, 512 if big_vmem else 256, 8)
    # K/V-resident fast path: DMA K/V once per batch element instead of once per q-tile.
    if tkv < N and _attn_vmem_estimate(tq, N, num_heads, hd, C, comp_bytes) <= vmem_limit:
        tkv = N
    # Shrink the q tile until the working set fits the scoped-VMEM budget.
    while tq > 8 and _attn_vmem_estimate(tq, tkv, num_heads, hd, C, comp_bytes) > vmem_limit:
        new_tq = _tile(N, max(8, tq // 2), 8)
        if new_tq >= tq:
            break
        tq = new_tq
    return tq, tkv


def self_attention_pallas(x, w_qkv, b_qkv, w_proj, b_proj, num_heads,
                          compute_dtype=jnp.bfloat16, out_dtype=jnp.float32):
    """x: (B, N, C) f32.  w_qkv: (C, 3C), b_qkv: (1, 3C), w_proj: (C, C), b_proj: (1, C).

    compute_dtype (default bf16) is the MXU-input / HBM-streaming dtype for x, Q/K/V and
    the weights; softmax statistics and all matmul accumulation stay in f32.
    """
    B, N, C = x.shape
    hd = C // num_heads
    scale = hd ** (-0.5)
    comp_bytes = jnp.dtype(compute_dtype).itemsize
    vmem_limit = _vmem_limit_bytes()

    # Fold the softmax scale into the q slice of the qkv projection: removes the
    # per-kv-step O(H*tq*hd) scale+cast from the attention inner loop.
    scale_vec = jnp.concatenate(
        [jnp.full((C,), scale, jnp.float32), jnp.ones((2 * C,), jnp.float32)])
    w_qkv_c = (w_qkv * scale_vec[None, :]).astype(compute_dtype)
    b_qkv_f32 = (b_qkv * scale_vec[None, :]).astype(jnp.float32)

    # 1) fused qkv projection, emitted in compute_dtype (halves the qkv writeback and
    #    the Q/K/V streaming into the flash kernel)
    qkv = _linear_pallas(x.reshape(B * N, C).astype(compute_dtype),
                         w_qkv_c, b_qkv_f32,
                         out_dtype=compute_dtype, vmem_limit=vmem_limit)

    # 2) head split in the wrapper (XLA layout plumbing, now in compute_dtype).
    #    Same as torch reshape + permute(2, 0, 3, 1, 4).
    qkv = qkv.reshape(B, N, 3, num_heads, hd).transpose(2, 0, 3, 1, 4)
    q, k, v = qkv[0], qkv[1], qkv[2]                            # (B, H, N, hd)

    # Projection weight pre-split by head so the epilogue contracts directly against
    # the (H, tq, hd) accumulator; cast once here (no in-kernel weight cast).
    wp = w_proj.reshape(num_heads, hd, C).astype(compute_dtype)
    bp = b_proj.astype(jnp.float32)

    # 3) per-generation tiling + flash attention fused with the output projection
    tq, tkv = _choose_attn_tiles(N, C, num_heads, comp_bytes, vmem_limit)

    kernel = functools.partial(_flash_attn_proj_kernel, compute_dtype=compute_dtype)
    return pl.pallas_call(
        kernel,
        out_shape=jax.ShapeDtypeStruct((B, N, C), out_dtype),
        grid_spec=pltpu.PrefetchScalarGridSpec(
            num_scalar_prefetch=0,
            grid=(B, N // tq, N // tkv),
            in_specs=[
                pl.BlockSpec((1, num_heads, tq, hd), lambda b, qi, ki: (b, 0, qi, 0)),
                pl.BlockSpec((1, num_heads, tkv, hd), lambda b, qi, ki: (b, 0, ki, 0)),
                pl.BlockSpec((1, num_heads, tkv, hd), lambda b, qi, ki: (b, 0, ki, 0)),
                pl.BlockSpec((num_heads, hd, C), lambda b, qi, ki: (0, 0, 0)),  # constant -> fetched once
                pl.BlockSpec((1, C), lambda b, qi, ki: (0, 0)),                 # constant -> fetched once
            ],
            out_specs=pl.BlockSpec((1, tq, C), lambda b, qi, ki: (b, qi, 0)),
            scratch_shapes=[
                pltpu.VMEM((num_heads, tq, 1), jnp.float32),    # m (running max)
                pltpu.VMEM((num_heads, tq, 1), jnp.float32),    # l (running denom)
                pltpu.VMEM((num_heads, tq, hd), jnp.float32),   # acc (running PV)
            ],
        ),
        compiler_params=pltpu.CompilerParams(
            dimension_semantics=("parallel", "parallel", "arbitrary"),
            vmem_limit_bytes=vmem_limit),
    )(q, k, v, wp, bp)


def self_attention_reference(x, w_qkv, b_qkv, w_proj, b_proj, num_heads):
    """Pure-JAX reference mirroring the PyTorch forward (eval mode)."""
    B, N, C = x.shape
    hd = C // num_heads
    scale = hd ** (-0.5)
    qkv = x @ w_qkv + b_qkv[0]                                  # (B, N, 3C)
    qkv = qkv.reshape(B, N, 3, num_heads, hd).transpose(2, 0, 3, 1, 4)
    q, k, v = qkv[0], qkv[1], qkv[2]                            # (B, H, N, hd)
    attn = (q @ jnp.swapaxes(k, -2, -1)) * scale
    attn = jax.nn.softmax(attn, axis=-1)
    y = (attn @ v).transpose(0, 2, 1, 3).reshape(B, N, C)
    return y @ w_proj + b_proj[0]


if __name__ == "__main__":
    B, N, C = 2, 8, 32
    num_heads = 8

    key = jax.random.PRNGKey(0)
    kx, k1, k2, k3, k4 = jax.random.split(key, 5)

    x = jax.random.normal(kx, (B, N, C), dtype=jnp.float32)
    # parameters stored pre-transposed as (in, out)
    w_qkv = jax.random.normal(k1, (C, 3 * C), dtype=jnp.float32) * (1.0 / jnp.sqrt(C))
    b_qkv = jax.random.normal(k2, (1, 3 * C), dtype=jnp.float32) * 0.01
    w_proj = jax.random.normal(k3, (C, C), dtype=jnp.float32) * (1.0 / jnp.sqrt(C))
    b_proj = jax.random.normal(k4, (1, C), dtype=jnp.float32) * 0.01

    ref = self_attention_reference(x, w_qkv, b_qkv, w_proj, b_proj, num_heads)

    # default path: bf16 MXU inputs / bf16 Q,K,V streaming, f32 accumulation, f32 output
    out_bf16 = self_attention_pallas(x, w_qkv, b_qkv, w_proj, b_proj, num_heads)
    out_bf16 = jax.block_until_ready(out_bf16)
    assert out_bf16.shape == (B, N, C)
    assert jnp.allclose(out_bf16, ref, atol=1.5e-1, rtol=1.5e-1), "Pallas bf16 output mismatch"

    # full-f32 compute path (tighter check of the kernel math)
    out_f32 = self_attention_pallas(x, w_qkv, b_qkv, w_proj, b_proj, num_heads,
                                    compute_dtype=jnp.float32)
    out_f32 = jax.block_until_ready(out_f32)
    assert jnp.allclose(out_f32, ref, atol=2e-2, rtol=2e-2), "Pallas f32 output mismatch"

    print("KERNEL_OK")
</pallas_src>

<mosaic_0001>
module attributes {stable_mosaic.version = 11 : i64} {
  func.func @_linear_kernel(%arg0: i32, %arg1: i32, %arg2: memref<16x32xbf16, #tpu.memory_space<vmem>>, %arg3: memref<32x96xbf16, #tpu.memory_space<vmem>>, %arg4: memref<1x96xf32, #tpu.memory_space<vmem>>, %arg5: memref<16x96xbf16, #tpu.memory_space<vmem>>) attributes {dimension_semantics = [#tpu.dimension_semantics<parallel>, #tpu.dimension_semantics<parallel>], iteration_bounds = array<i64: 1, 1>, scalar_prefetch = 0 : i64, scratch_operands = 0 : i64, tpu.core_type = #tpu.core_type<tc>, window_params = [{transform_indices = @transform_0, window_bounds = array<i64: 16, 32>}, {transform_indices = @transform_1, window_bounds = array<i64: 32, 96>}, {transform_indices = @transform_2, window_bounds = array<i64: 1, 96>}, {transform_indices = @transform_3, window_bounds = array<i64: 16, 96>}]} {
    %c0 = arith.constant 0 : index
    %c0_0 = arith.constant 0 : index
    %0 = vector.load %arg2[%c0, %c0_0] : memref<16x32xbf16, #tpu.memory_space<vmem>>, vector<16x32xbf16>
    %c0_1 = arith.constant 0 : index
    %c0_2 = arith.constant 0 : index
    %1 = vector.load %arg3[%c0_1, %c0_2] : memref<32x96xbf16, #tpu.memory_space<vmem>>, vector<32x96xbf16>
    %cst = arith.constant dense<0.000000e+00> : vector<16x96xf32>
    %2 = tpu.matmul %0, %1, %cst {dimension_numbers = #tpu.dot_dimension_numbers<[1], [0], [0], [1], [0, 0, 1, 1], [], []>} : vector<16x32xbf16>, vector<32x96xbf16>, vector<16x96xf32> -> vector<16x96xf32>
    %c0_3 = arith.constant 0 : index
    %c0_4 = arith.constant 0 : index
    %3 = vector.load %arg4[%c0_3, %c0_4] : memref<1x96xf32, #tpu.memory_space<vmem>>, vector<1x96xf32>
    %4 = vector.shape_cast %3 : vector<1x96xf32> to vector<96xf32>
    %5 = vector.shape_cast %4 : vector<96xf32> to vector<1x96xf32>
    %6 = vector.broadcast %5 : vector<1x96xf32> to vector<16x96xf32>
    %7 = arith.addf %2, %6 : vector<16x96xf32>
    %8 = arith.truncf %7 : vector<16x96xf32> to vector<16x96xbf16>
    %c0_5 = arith.constant 0 : index
    %c0_6 = arith.constant 0 : index
    %9 = vector.load %arg5[%c0_5, %c0_6] : memref<16x96xbf16, #tpu.memory_space<vmem>>, vector<16x96xbf16>
    tpu.vector_store %arg5[%c0_5, %c0_6], %8 {strides = array<i32>} : memref<16x96xbf16, #tpu.memory_space<vmem>>, vector<16x96xbf16>,
    return
  }
  func.func @transform_0(%arg0: i32, %arg1: i32) -> (i32, i32) {
    %c0_i32 = arith.constant 0 : i32
    %c0_i32_0 = arith.constant 0 : i32
    return %arg0, %c0_i32 : i32, i32
  }
  func.func @transform_1(%arg0: i32, %arg1: i32) -> (i32, i32) {
    %c0_i32 = arith.constant 0 : i32
    %c0_i32_0 = arith.constant 0 : i32
    return %c0_i32, %arg1 : i32, i32
  }
  func.func @transform_2(%arg0: i32, %arg1: i32) -> (i32, i32) {
    %c0_i32 = arith.constant 0 : i32
    %c0_i32_0 = arith.constant 0 : i32
    return %c0_i32, %arg1 : i32, i32
  }
  func.func @transform_3(%arg0: i32, %arg1: i32) -> (i32, i32) {
    %c0_i32 = arith.constant 0 : i32
    return %arg0, %arg1 : i32, i32
  }
}

</mosaic_0001>

<llo_original>
// kernel: tpu_custom_call.1
$region0: #{tpu_custom_call.1}
  #allocation0 [shape = 'u32[]', space=smem, size = 0x4, offset = 0x4, fixed_abs, tag = 'smem constant byte address 0x4 - core index']
  #allocation1 [shape = 'u32[144,128]{1,0:T(1,128)}', space=vmem, size = 0x12000, scoped, tag = 'internal scratch']
  %s0 = inlined_call_operand.hbm [shape: bf16[16,32], index: 0, kind: input, shape index: {}]
  %s1 = inlined_call_operand.hbm [shape: bf16[32,96], index: 1, kind: input, shape index: {}]
  %s2 = inlined_call_operand.vmem [shape: f32[1,96], index: 2, kind: input, shape index: {}]
  %s3 = inlined_call_operand.hbm [shape: bf16[16,96], index: 3, kind: output, shape index: {}]
  %s4 = sld [smem:[#allocation0]]
  $region30: #{tpu_custom_call.1} parent=0
    _
  %s6 = ssub.s32 1, %s4
  %s7 = scalar_select 0, %s6, %s4
  $region1: #{tpu_custom_call.1} parent=0
    #allocation2 [shape = 'u8[4096]{0}', space=vmem, size = 0x1000, scoped, tag = 'input window, operand 0, single buffered']
    #allocation3 [shape = 's32[1]{0}', space=sflag, size = 0x4, scoped, tag = 'scoped memory for tpu_custom_call.1']
    #allocation4 [shape = 's32[1]{0}', space=sflag, size = 0x4, scoped, tag = 'scoped memory for tpu_custom_call.1']
    #allocation5 [shape = 'u8[8192]{0}', space=vmem, size = 0x2000, scoped, tag = 'input window, operand 1, single buffered']
    #allocation6 [shape = 's32[1]{0}', space=sflag, size = 0x4, scoped, tag = 'scoped memory for tpu_custom_call.1']
    #allocation7 [shape = 'u8[4096]{0}', space=vmem, size = 0x1000, scoped, tag = 'output window, operand 0, single buffered']
    %8 = vsyncpa [#allocation3], 0
    %9 = vsyncpa [#allocation6], 0
    %10 = vsyncpa [#allocation4], 0
    // Predicated region
    $region2: #{tpu_custom_call.1} parent=1 // pred_check
      _
    $region3: #{tpu_custom_call.1} parent=1 // pred_check_branch
      %12 = sbr.rel (0) target = $region5
    $region4: #{tpu_custom_call.1} parent=1 // pred_region
      %s14 = ssub.s32 128, 128
      %15 = vsyncadd [#allocation3], %s14
      %s16 = sshll.u32 [#allocation2], 4
      %s17 = int_to_ptr.vmem [resolvable:$true] %s16
      %22 = dma.hbm_to_vmem [thread:$0]  %s0, 128, %s17, [#allocation3], 64, 64, 4
    $region5: #{tpu_custom_call.1} parent=1 // pred_fallthru
      _
    // Predicated region
    $region6: #{tpu_custom_call.1} parent=1 // pred_check
      _
    $region7: #{tpu_custom_call.1} parent=1 // pred_check_branch
      %24 = sbr.rel (0) target = $region9
    $region8: #{tpu_custom_call.1} parent=1 // pred_region
      %s26 = ssub.s32 256, 256
      %27 = vsyncadd [#allocation6], %s26
      %s28 = sshll.u32 [#allocation5], 4
      %s29 = int_to_ptr.vmem [resolvable:$true] %s28
      %34 = dma.hbm_to_vmem [thread:$0]  %s1, 256, %s29, [#allocation6], 64, 64, 4
    $region9: #{tpu_custom_call.1} parent=1 // pred_fallthru
      _
    // Predicated region
    $region10: #{tpu_custom_call.1} parent=1 // pred_check
      _
    $region11: #{tpu_custom_call.1} parent=1 // pred_check_branch
      %36 = sbr.rel (0) target = $region13
    $region12: #{tpu_custom_call.1} parent=1 // pred_region
      _
    $region13: #{tpu_custom_call.1} parent=1 // pred_fallthru
      _
    // Predicated region
    $region14: #{tpu_custom_call.1} parent=1 // pred_check
      _
    $region15: #{tpu_custom_call.1} parent=1 // pred_check_branch
      %38 = sbr.rel (0) target = $region17
    $region16: #{tpu_custom_call.1} parent=1 // pred_region
      %39 = dma.done [#allocation3], 128
    $region17: #{tpu_custom_call.1} parent=1 // pred_fallthru
      _
    // Predicated region
    $region18: #{tpu_custom_call.1} parent=1 // pred_check
      _
    $region19: #{tpu_custom_call.1} parent=1 // pred_check_branch
      %41 = sbr.rel (0) target = $region21
    $region20: #{tpu_custom_call.1} parent=1 // pred_region
      %42 = dma.done [#allocation6], 256
    $region21: #{tpu_custom_call.1} parent=1 // pred_fallthru
      _
    %v44 = vld [vmem:[#allocation2] sm:$0xf]
    %v45 = vld [vmem:[#allocation2 + $0x4] sm:$0xf]
    %v46 = vld [vmem:[#allocation5] sm:$0xf]
    %v47 = vld [vmem:[#allocation5 + $0x4] sm:$0xf]
    %v48 = vld [vmem:[#allocation5 + $0x8] sm:$0xf]
    %v49 = vld [vmem:[#allocation5 + $0xc] sm:$0xf]
    %v50 = vld [vmem:[%s2] sm:$0x1]
    %v52 = vlaneseq
    %v53 = vshrl.u32 %v52, 7
    %v54 = vsub.s32 0, %v53
    %v55 = vrot.slane %v50, %v54
    %v59 = vunpack.c.l.b16 %v44
    %v60 = vunpack.c.l.b16 %v45
    %v61 = vpack.c.b16 %v60, %v59
    %v66 = vunpack.c.l.b16 %v46
    %v67 = vunpack.c.l.b16 %v47
    %v68 = vunpack.c.l.b16 %v48
    %v69 = vunpack.c.l.b16 %v49
    %v70 = vpack.c.b16 %v67, %v66
    %v71 = vpack.c.b16 %v69, %v68
    %vm74 = vcmask 261120
    %v76 = vsel %vm74, %v61, 0
    %78 = vmatprep.subr.bf16.mxu0 0
    %79 = vmatpush1.bf16.msra.mxu0 0
    %80 = vmatprep.subr.bf16.mxu0 0
    %81 = vmatpush1.bf16.msra.mxu0 0
    %82 = vmatprep.subr.bf16.mxu0 0
    %83 = vmatpush1.bf16.msra.mxu0 0
    %84 = vmatprep.subr.bf16.mxu0 0
    %85 = vmatpush1.bf16.msra.mxu0 0
    %86 = vmatprep.subr.bf16.mxu0 0
    %87 = vmatpush1.bf16.msra.mxu0 0
    %88 = vmatprep.subr.bf16.mxu0 0
    %89 = vmatpush1.bf16.msra.mxu0 0
    %90 = vmatprep.subr.bf16.mxu0 0
    %91 = vmatpush1.bf16.msra.mxu0 %v71
    %92 = vmatprep.subr.bf16.mxu0 0
    %93 = vmatpush1.bf16.msra.mxu0 %v70
    %94 = vmatprep.subr.bf16.mxu0 0
    %95 = vmatpush2.bf16.msra.mxu0 0
    %96 = vmatprep.subr.bf16.mxu0 0
    %97 = vmatpush2.bf16.msra.mxu0 0
    %98 = vmatprep.subr.bf16.mxu0 0
    %99 = vmatpush2.bf16.msra.mxu0 0
    %100 = vmatprep.subr.bf16.mxu0 0
    %101 = vmatpush2.bf16.msra.mxu0 0
    %102 = vmatprep.subr.bf16.mxu0 0
    %103 = vmatpush2.bf16.msra.mxu0 0
    %104 = vmatprep.subr.bf16.mxu0 0
    %105 = vmatpush2.bf16.msra.mxu0 0
    %106 = vmatprep.subr.bf16.mxu0 0
    %107 = vmatpush2.bf16.msra.mxu0 0
    %108 = vmatprep.subr.bf16.mxu0 0
    %109 = vmatpush2.bf16.msra.mxu0 0
    %110 = vmatprep.mubr.bf16.mxu0 0
    %111 = vmatmul.mubr.bf16.gmra.mxu0 %v76
    %v112 = vpop.f32.mrf.mxu0
    %v113 = vadd.f32 %v55, %v112
    %v114 = vpop.f32.mrf.mxu0
    %v115 = vpop.f32.mrf.mxu0
    %v116 = vadd.f32 %v55, %v115
    %v117 = vpop.f32.mrf.mxu0
    %118 = vdwg.mxu0
    %v119 = vpack.c.bf16 %v116, %v113
    %v121 = vunpack.c.l.b16 %v119
    %v122 = vunpack.c.h.b16 %v119
    %v123 = vpack.c.b16 %v121, %v121
    %v124 = vpack.c.b16 %v122, %v122
    %vm127 = vcmask 781312
    %128 = vst.msk [vmem:[#allocation7] sm:$0xf] %vm127, %v123
    %129 = vst.msk [vmem:[#allocation7 + $0x4] sm:$0xf] %vm127, %v124
    // Predicated region
    $region22: #{tpu_custom_call.1} parent=1 // pred_check
      _
    $region23: #{tpu_custom_call.1} parent=1 // pred_check_branch
      %131 = sbr.rel (0) target = $region25
    $region24: #{tpu_custom_call.1} parent=1 // pred_region
      %s133 = ssub.s32 128, 128
      %134 = vsyncadd [#allocation4], %s133
      %s135 = sshll.u32 [#allocation7], 4
      %s136 = int_to_ptr.vmem [resolvable:$true] %s135
      %141 = dma.vmem_to_hbm [thread:$0]  %s136, 128, %s3, [#allocation4], 64, 64, 4
    $region25: #{tpu_custom_call.1} parent=1 // pred_fallthru
      _
    // Predicated region
    $region26: #{tpu_custom_call.1} parent=1 // pred_check
      _
    $region27: #{tpu_custom_call.1} parent=1 // pred_check_branch
      %143 = sbr.rel (0) target = $region29
    $region28: #{tpu_custom_call.1} parent=1 // pred_region
      %144 = dma.done [#allocation4], 128
    $region29: #{tpu_custom_call.1} parent=1 // pred_fallthru
      _
    %145 = vsyncpa [#allocation3], 1
    %146 = vsyncpa [#allocation6], 1
    %147 = vsyncpa [#allocation4], 1

</llo_original>
